<compile_context>
chip_gen: v7x
topology: tpu7x:2x2x1
jax: 0.10.0
libtpu: 0.0.40
codegen_flags: <defaults>
</compile_context>

<pallas_src>
import functools

import jax
import jax.numpy as jnp
from jax import lax
from jax.experimental import pallas as pl
from jax.experimental.pallas import tpu as pltpu


def resnet_block_kernel(x_ref, band1_ref, bias1_ref, band2_ref, bias2_ref, o_ref, *, img_h):
    # x_ref    : (Htot, L)   Htot = (B//fold)*H rows, L = fold*W*C lanes (128 here)
    # band*_ref: (3*L, L)    stacked band matrices, rows ordered ky=0,1,2 (block-diag per fold)
    # bias*_ref: (1, L)      bias[c] tiled across (fold, W)
    # o_ref    : (Htot, L)
    Htot = x_ref.shape[0]
    x = x_ref[...]                                            # (Htot, L) f32

    row = lax.broadcasted_iota(jnp.int32, (Htot, 1), 0)
    row_in_img = row if Htot == img_h else row % img_h        # per-image row index
    first_row = row_in_img == 0
    last_row = row_in_img == img_h - 1

    def conv3x3(inp, band_ref, bias_ref):
        # ky=0 needs inp[y-1]: roll rows down by one, zero the (virtually padded) top row.
        up = jnp.where(first_row, 0.0, pltpu.roll(inp, 1, 0))
        # ky=2 needs inp[y+1]: roll rows up by one, zero the (virtually padded) bottom row.
        dn = jnp.where(last_row, 0.0, pltpu.roll(inp, Htot - 1, 0))
        # Masked boundary rows make the roll wraparound across folded/stacked images harmless.
        stacked = jnp.concatenate([up, inp, dn], axis=-1)     # (Htot, 3L)
        acc = jnp.dot(stacked, band_ref[...], preferred_element_type=jnp.float32)
        return acc + bias_ref[...]                            # (1, L) broadcasts over rows

    h1 = jnp.maximum(conv3x3(x, band1_ref, bias1_ref), 0.0)
    out = conv3x3(h1, band2_ref, bias2_ref) + x               # residual add
    o_ref[...] = out.astype(o_ref.dtype)


def _band_matrices(w, W):
    """Fold the 3 horizontal taps + channel contraction of a 3x3 HWIO conv weight into
    three (W*C, W*C) band matrices (one per vertical tap), with 'same' padding along W
    encoded as structural zeros.  M[ky][x_in*C+ci, x_out*C+co] = w[ky, x_in-x_out+1, ci, co]."""
    C = w.shape[2]
    xi = jnp.arange(W)
    diff = xi[:, None] - xi[None, :]                          # x_in - x_out, (W, W)
    valid = jnp.abs(diff) <= 1
    kx = jnp.clip(diff + 1, 0, 2)                             # horizontal tap index
    band = w[:, kx]                                           # (3, W, W, C, C)
    band = jnp.where(valid[None, :, :, None, None], band, 0.0)
    band = band.transpose(0, 1, 3, 2, 4).reshape(3, W * C, W * C)
    return band


def _stacked_folded_bands(w, W, fold):
    """Block-diagonal replicate the band matrices over `fold` batch elements folded onto
    the lane axis, then stack the 3 vertical taps along the contraction axis: (3*L, L)."""
    band = _band_matrices(w, W)                               # (3, WC, WC)
    WC = band.shape[1]
    L = fold * WC
    eye = jnp.eye(fold, dtype=band.dtype)
    big = jnp.einsum('fg,kij->kfigj', eye, band).reshape(3, L, L)
    return big.reshape(3 * L, L)                              # rows ordered ky = 0, 1, 2


@jax.jit
def resnet_block_light(x_nchw, w1, b1, w2, b2):
    """x_nchw: (B, C, H, W) float32; w*: (3,3,C,C) HWIO; b*: (C,).
    Returns (B, C, H, W), matching PyTorch ResnetBlock_light.forward."""
    B, C, H, W = x_nchw.shape
    WC = W * C

    # Fold batch elements onto the lane axis so each row is >= 128 lanes wide.
    fold = 1
    if WC < 128 and 128 % WC == 0:
        f = 128 // WC
        if B % f == 0:
            fold = f
    B2 = B // fold
    L = fold * WC
    Htot = B2 * H

    # Boundary layout glue: NCHW -> lane-dense (fold, W, C) rows. No spatial padding needed.
    x = jnp.transpose(x_nchw, (0, 2, 3, 1))                   # NHWC
    x = x.reshape(B2, fold, H, WC).transpose(0, 2, 1, 3).reshape(Htot, L)

    # Weight preprocessing (tiny; done once per weight update in a real model).
    band1 = _stacked_folded_bands(w1, W, fold)                # (3L, L)
    band2 = _stacked_folded_bands(w2, W, fold)
    b1r = jnp.tile(b1, fold * W).reshape(1, L)
    b2r = jnp.tile(b2, fold * W).reshape(1, L)

    whole_vmem = pl.BlockSpec(memory_space=pltpu.MemorySpace.VMEM)
    out2d = pl.pallas_call(
        functools.partial(resnet_block_kernel, img_h=H),
        out_shape=jax.ShapeDtypeStruct((Htot, L), x.dtype),
        in_specs=[whole_vmem] * 5,
        out_specs=whole_vmem,
    )(x, band1, b1r, band2, b2r)

    # Back to NCHW.
    out = out2d.reshape(B2, H, fold, W, C).transpose(0, 2, 1, 3, 4).reshape(B, H, W, C)
    return jnp.transpose(out, (0, 3, 1, 2))


def _reference(x_nchw, w1, b1, w2, b2):
    # Pure-JAX reference using lax.conv_general_dilated (NHWC / HWIO).
    xh = jnp.transpose(x_nchw, (0, 2, 3, 1))
    dn = lax.conv_dimension_numbers(xh.shape, w1.shape, ('NHWC', 'HWIO', 'NHWC'))
    h = lax.conv_general_dilated(xh, w1, (1, 1), 'SAME', dimension_numbers=dn) + b1
    h = jnp.maximum(h, 0.0)
    h = lax.conv_general_dilated(h, w2, (1, 1), 'SAME', dimension_numbers=dn) + b2
    return jnp.transpose(h + xh, (0, 3, 1, 2))


if __name__ == "__main__":
    key = jax.random.PRNGKey(0)
    B, C, H, W = 2, 4, 16, 16   # in_c = 4

    k1, k2, k3, k4, k5 = jax.random.split(key, 5)
    x = jax.random.normal(k1, (B, C, H, W), dtype=jnp.float32)

    # Deterministic Conv2d-style init (uniform in +-1/sqrt(fan_in)); weights kept in
    # HWIO=(3,3,C,C), the transpose of PyTorch's OIHW=(C,C,3,3).
    fan_in = C * 3 * 3
    bound = 1.0 / (fan_in ** 0.5)
    w1 = jax.random.uniform(k2, (3, 3, C, C), jnp.float32, -bound, bound)
    b1 = jax.random.uniform(k3, (C,), jnp.float32, -bound, bound)
    w2 = jax.random.uniform(k4, (3, 3, C, C), jnp.float32, -bound, bound)
    b2 = jax.random.uniform(k5, (C,), jnp.float32, -bound, bound)

    out = resnet_block_light(x, w1, b1, w2, b2)
    out = jax.block_until_ready(out)

    ref = _reference(x, w1, b1, w2, b2)
    assert out.shape == (B, C, H, W)
    assert jnp.allclose(out, ref, atol=1e-4, rtol=1e-4), "mismatch vs conv reference"

    print("KERNEL_OK")
</pallas_src>

<mosaic_0001>
module attributes {stable_mosaic.version = 11 : i64} {
  func.func @resnet_block_kernel(%arg0: memref<16x128xf32, #tpu.memory_space<vmem>>, %arg1: memref<384x128xf32, #tpu.memory_space<vmem>>, %arg2: memref<1x128xf32, #tpu.memory_space<vmem>>, %arg3: memref<384x128xf32, #tpu.memory_space<vmem>>, %arg4: memref<1x128xf32, #tpu.memory_space<vmem>>, %arg5: memref<16x128xf32, #tpu.memory_space<vmem>>) attributes {dimension_semantics = [], scalar_prefetch = 0 : i64, scratch_operands = 0 : i64, tpu.core_type = #tpu.core_type<tc>} {
    %c0 = arith.constant 0 : index
    %c0_0 = arith.constant 0 : index
    %0 = vector.load %arg0[%c0, %c0_0] : memref<16x128xf32, #tpu.memory_space<vmem>>, vector<16x128xf32>
    %1 = tpu.iota {dimensions = array<i32: 0>} : vector<16x1xi32>
    %c0_i32 = arith.constant 0 : i32
    %2 = vector.broadcast %c0_i32 : i32 to vector<16x1xi32>
    %3 = arith.cmpi eq, %1, %2 : vector<16x1xi32>
    %c15_i32 = arith.constant 15 : i32
    %4 = vector.broadcast %c15_i32 : i32 to vector<16x1xi32>
    %5 = arith.cmpi eq, %1, %4 : vector<16x1xi32>
    %c1_i32 = arith.constant 1 : i32
    %6 = tpu.dynamic_rotate %0 by %c1_i32 dim 0 : vector<16x128xf32>, i32 -> vector<16x128xf32>
    %cst = arith.constant 0.000000e+00 : f32
    %7 = vector.shape_cast %3 : vector<16x1xi1> to vector<16x1xi1>
    %8 = vector.broadcast %7 : vector<16x1xi1> to vector<16x128xi1>
    %9 = vector.broadcast %cst : f32 to vector<16x128xf32>
    %10 = arith.select %8, %9, %6 : vector<16x128xi1>, vector<16x128xf32>
    %c15_i32_1 = arith.constant 15 : i32
    %11 = tpu.dynamic_rotate %0 by %c15_i32_1 dim 0 : vector<16x128xf32>, i32 -> vector<16x128xf32>
    %cst_2 = arith.constant 0.000000e+00 : f32
    %12 = vector.shape_cast %5 : vector<16x1xi1> to vector<16x1xi1>
    %13 = vector.broadcast %12 : vector<16x1xi1> to vector<16x128xi1>
    %14 = vector.broadcast %cst_2 : f32 to vector<16x128xf32>
    %15 = arith.select %13, %14, %11 : vector<16x128xi1>, vector<16x128xf32>
    %16 = tpu.concatenate %10, %0, %15 in 1 : vector<16x128xf32>, vector<16x128xf32>, vector<16x128xf32> -> vector<16x384xf32>
    %c0_3 = arith.constant 0 : index
    %c0_4 = arith.constant 0 : index
    %17 = vector.load %arg1[%c0_3, %c0_4] : memref<384x128xf32, #tpu.memory_space<vmem>>, vector<384x128xf32>
    %cst_5 = arith.constant dense<0.000000e+00> : vector<16x128xf32>
    %18 = tpu.matmul %16, %17, %cst_5 {dimension_numbers = #tpu.dot_dimension_numbers<[1], [0], [0], [1], [0, 0, 1, 1], [], []>} : vector<16x384xf32>, vector<384x128xf32>, vector<16x128xf32> -> vector<16x128xf32>
    %c0_6 = arith.constant 0 : index
    %c0_7 = arith.constant 0 : index
    %19 = vector.load %arg2[%c0_6, %c0_7] : memref<1x128xf32, #tpu.memory_space<vmem>>, vector<1x128xf32>
    %20 = vector.broadcast %19 : vector<1x128xf32> to vector<16x128xf32>
    %21 = arith.addf %18, %20 : vector<16x128xf32>
    %cst_8 = arith.constant 0.000000e+00 : f32
    %22 = vector.broadcast %cst_8 : f32 to vector<16x128xf32>
    %23 = arith.maximumf %21, %22 : vector<16x128xf32>
    %c1_i32_9 = arith.constant 1 : i32
    %24 = tpu.dynamic_rotate %23 by %c1_i32_9 dim 0 : vector<16x128xf32>, i32 -> vector<16x128xf32>
    %cst_10 = arith.constant 0.000000e+00 : f32
    %25 = vector.shape_cast %3 : vector<16x1xi1> to vector<16x1xi1>
    %26 = vector.broadcast %25 : vector<16x1xi1> to vector<16x128xi1>
    %27 = vector.broadcast %cst_10 : f32 to vector<16x128xf32>
    %28 = arith.select %26, %27, %24 : vector<16x128xi1>, vector<16x128xf32>
    %c15_i32_11 = arith.constant 15 : i32
    %29 = tpu.dynamic_rotate %23 by %c15_i32_11 dim 0 : vector<16x128xf32>, i32 -> vector<16x128xf32>
    %cst_12 = arith.constant 0.000000e+00 : f32
    %30 = vector.shape_cast %5 : vector<16x1xi1> to vector<16x1xi1>
    %31 = vector.broadcast %30 : vector<16x1xi1> to vector<16x128xi1>
    %32 = vector.broadcast %cst_12 : f32 to vector<16x128xf32>
    %33 = arith.select %31, %32, %29 : vector<16x128xi1>, vector<16x128xf32>
    %34 = tpu.concatenate %28, %23, %33 in 1 : vector<16x128xf32>, vector<16x128xf32>, vector<16x128xf32> -> vector<16x384xf32>
    %c0_13 = arith.constant 0 : index
    %c0_14 = arith.constant 0 : index
    %35 = vector.load %arg3[%c0_13, %c0_14] : memref<384x128xf32, #tpu.memory_space<vmem>>, vector<384x128xf32>
    %cst_15 = arith.constant dense<0.000000e+00> : vector<16x128xf32>
    %36 = tpu.matmul %34, %35, %cst_15 {dimension_numbers = #tpu.dot_dimension_numbers<[1], [0], [0], [1], [0, 0, 1, 1], [], []>} : vector<16x384xf32>, vector<384x128xf32>, vector<16x128xf32> -> vector<16x128xf32>
    %c0_16 = arith.constant 0 : index
    %c0_17 = arith.constant 0 : index
    %37 = vector.load %arg4[%c0_16, %c0_17] : memref<1x128xf32, #tpu.memory_space<vmem>>, vector<1x128xf32>
    %38 = vector.broadcast %37 : vector<1x128xf32> to vector<16x128xf32>
    %39 = arith.addf %36, %38 : vector<16x128xf32>
    %40 = arith.addf %39, %0 : vector<16x128xf32>
    %c0_18 = arith.constant 0 : index
    %c0_19 = arith.constant 0 : index
    %41 = vector.load %arg5[%c0_18, %c0_19] : memref<16x128xf32, #tpu.memory_space<vmem>>, vector<16x128xf32>
    tpu.vector_store %arg5[%c0_18, %c0_19], %40 {strides = array<i32>} : memref<16x128xf32, #tpu.memory_space<vmem>>, vector<16x128xf32>,
    return
  }
}

</mosaic_0001>

<llo_original>
// kernel: tile.13
$region0: #{tile.13}
  #allocation0 [shape = 's32[1]{0}', space=sflag, size = 0x4, scoped, tag = 'scoped memory for tile.13']
  %s0 = inlined_call_operand.vmem [shape: f32[4], index: 0, kind: input, shape index: {}]
  %s1 = inlined_call_operand.vmem [shape: f32[32,4], index: 1, kind: output, shape index: {}]
  // Predicated region
  $region2: #{tile.13} parent=0 // pred_check
    _
  $region3: #{tile.13} parent=0 // pred_check_branch
    %3 = sbr.rel (0) target = $region5
  $region4: #{tile.13} parent=0 // pred_region
    _
  $region5: #{tile.13} parent=0 // pred_fallthru
    _
  %v4 = vld [vmem:[%s0] ss:$0 sm:$0xff]
  %5 = vst [vmem:[%s1] sm:$0xff] %v4
  %s6 = scalar_lea.vmem %s1, 8
  %7 = vst [vmem:[%s6] sm:$0xff] %v4
  %s8 = scalar_lea.vmem %s1, 16
  %9 = vst [vmem:[%s8] sm:$0xff] %v4
  %s10 = scalar_lea.vmem %s1, 24
  %11 = vst [vmem:[%s10] sm:$0xff] %v4

// kernel: tile.14
$region0: #{tile.14}
  %s0 = inlined_call_operand.vmem [shape: f32[32,4], index: 0, kind: input, shape index: {}]
  %s1 = inlined_call_operand.vmem [shape: f32[1,128], index: 1, kind: output, shape index: {}]
  $region1: #{tile.14} parent=0
    #allocation0 [shape = 'u8[4096]{0}', space=vmem, size = 0x1000, scoped, tag = 'scoped mem for output reshape']
    %v2 = vld [vmem:[%s0] sm:$0x1]
    %vm3 = vcmask 31744
    %4 = vst.msk [vmem:[#allocation0] sm:$0x1] %vm3, %v2
    %s5 = scalar_lea.vmem %s0, 31
    %v6 = vld [vmem:[%s5] sm:$0x1]
    %7 = vrot.lane.b32.xlu0 %v6, 124
    %v8 = vpop.permute.xlu0 %7
    %vm9 = vcmask 1048544
    %10 = vst.msk [vmem:[#allocation0] sm:$0x1] %vm9, %v8
    %s11 = scalar_lea.vmem %s0, 30
    %v12 = vld [vmem:[%s11] sm:$0x1]
    %13 = vrot.lane.b32.xlu0 %v12, 120
    %v14 = vpop.permute.xlu0 %13
    %vm15 = vcmask 1015744
    %16 = vst.msk [vmem:[#allocation0] sm:$0x1] %vm15, %v14
    %s17 = scalar_lea.vmem %s0, 29
    %v18 = vld [vmem:[%s17] sm:$0x1]
    %19 = vrot.lane.b32.xlu0 %v18, 116
    %v20 = vpop.permute.xlu0 %19
    %vm21 = vcmask 982944
    %22 = vst.msk [vmem:[#allocation0] sm:$0x1] %vm21, %v20
    %s23 = scalar_lea.vmem %s0, 28
    %v24 = vld [vmem:[%s23] sm:$0x1]
    %25 = vrot.lane.b32.xlu0 %v24, 112
    %v26 = vpop.permute.xlu0 %25
    %vm27 = vcmask 950144
    %28 = vst.msk [vmem:[#allocation0] sm:$0x1] %vm27, %v26
    %s29 = scalar_lea.vmem %s0, 27
    %v30 = vld [vmem:[%s29] sm:$0x1]
    %31 = vrot.lane.b32.xlu0 %v30, 108
    %v32 = vpop.permute.xlu0 %31
    %vm33 = vcmask 917344
    %34 = vst.msk [vmem:[#allocation0] sm:$0x1] %vm33, %v32
    %s35 = scalar_lea.vmem %s0, 26
    %v36 = vld [vmem:[%s35] sm:$0x1]
    %37 = vrot.lane.b32.xlu0 %v36, 104
    %v38 = vpop.permute.xlu0 %37
    %vm39 = vcmask 884544
    %40 = vst.msk [vmem:[#allocation0] sm:$0x1] %vm39, %v38
    %s41 = scalar_lea.vmem %s0, 25
    %v42 = vld [vmem:[%s41] sm:$0x1]
    %43 = vrot.lane.b32.xlu0 %v42, 100
    %v44 = vpop.permute.xlu0 %43
    %vm45 = vcmask 851744
    %46 = vst.msk [vmem:[#allocation0] sm:$0x1] %vm45, %v44
    %s47 = scalar_lea.vmem %s0, 24
    %v48 = vld [vmem:[%s47] sm:$0x1]
    %49 = vrot.lane.b32.xlu0 %v48, 96
    %v50 = vpop.permute.xlu0 %49
    %vm51 = vcmask 818944
    %52 = vst.msk [vmem:[#allocation0] sm:$0x1] %vm51, %v50
    %s53 = scalar_lea.vmem %s0, 23
    %v54 = vld [vmem:[%s53] sm:$0x1]
    %55 = vrot.lane.b32.xlu0 %v54, 92
    %v56 = vpop.permute.xlu0 %55
    %vm57 = vcmask 786144
    %58 = vst.msk [vmem:[#allocation0] sm:$0x1] %vm57, %v56
    %s59 = scalar_lea.vmem %s0, 22
    %v60 = vld [vmem:[%s59] sm:$0x1]
    %61 = vrot.lane.b32.xlu0 %v60, 88
    %v62 = vpop.permute.xlu0 %61
    %vm63 = vcmask 753344
    %64 = vst.msk [vmem:[#allocation0] sm:$0x1] %vm63, %v62
    %s65 = scalar_lea.vmem %s0, 21
    %v66 = vld [vmem:[%s65] sm:$0x1]
    %67 = vrot.lane.b32.xlu0 %v66, 84
    %v68 = vpop.permute.xlu0 %67
    %vm69 = vcmask 720544
    %70 = vst.msk [vmem:[#allocation0] sm:$0x1] %vm69, %v68
    %s71 = scalar_lea.vmem %s0, 20
    %v72 = vld [vmem:[%s71] sm:$0x1]
    %73 = vrot.lane.b32.xlu0 %v72, 80
    %v74 = vpop.permute.xlu0 %73
    %vm75 = vcmask 687744
    %76 = vst.msk [vmem:[#allocation0] sm:$0x1] %vm75, %v74
    %s77 = scalar_lea.vmem %s0, 19
    %v78 = vld [vmem:[%s77] sm:$0x1]
    %79 = vrot.lane.b32.xlu0 %v78, 76
    %v80 = vpop.permute.xlu0 %79
    %vm81 = vcmask 654944
    %82 = vst.msk [vmem:[#allocation0] sm:$0x1] %vm81, %v80
    %s83 = scalar_lea.vmem %s0, 18
    %v84 = vld [vmem:[%s83] sm:$0x1]
    %85 = vrot.lane.b32.xlu0 %v84, 72
    %v86 = vpop.permute.xlu0 %85
    %vm87 = vcmask 622144
    %88 = vst.msk [vmem:[#allocation0] sm:$0x1] %vm87, %v86
    %s89 = scalar_lea.vmem %s0, 17
    %v90 = vld [vmem:[%s89] sm:$0x1]
    %91 = vrot.lane.b32.xlu0 %v90, 68
    %v92 = vpop.permute.xlu0 %91
    %vm93 = vcmask 589344
    %94 = vst.msk [vmem:[#allocation0] sm:$0x1] %vm93, %v92
    %s95 = scalar_lea.vmem %s0, 16
    %v96 = vld [vmem:[%s95] sm:$0x1]
    %97 = vrot.lane.b32.xlu0 %v96, 64
    %v98 = vpop.permute.xlu0 %97
    %vm99 = vcmask 556544
    %100 = vst.msk [vmem:[#allocation0] sm:$0x1] %vm99, %v98
    %s101 = scalar_lea.vmem %s0, 15
    %v102 = vld [vmem:[%s101] sm:$0x1]
    %103 = vrot.lane.b32.xlu0 %v102, 60
    %v104 = vpop.permute.xlu0 %103
    %vm105 = vcmask 523744
    %106 = vst.msk [vmem:[#allocation0] sm:$0x1] %vm105, %v104
    %s107 = scalar_lea.vmem %s0, 14
    %v108 = vld [vmem:[%s107] sm:$0x1]
    %109 = vrot.lane.b32.xlu0 %v108, 56
    %v110 = vpop.permute.xlu0 %109
    %vm111 = vcmask 490944
    %112 = vst.msk [vmem:[#allocation0] sm:$0x1] %vm111, %v110
    %s113 = scalar_lea.vmem %s0, 13
    %v114 = vld [vmem:[%s113] sm:$0x1]
    %115 = vrot.lane.b32.xlu0 %v114, 52
    %v116 = vpop.permute.xlu0 %115
    %vm117 = vcmask 458144
    %118 = vst.msk [vmem:[#allocation0] sm:$0x1] %vm117, %v116
    %s119 = scalar_lea.vmem %s0, 12
    %v120 = vld [vmem:[%s119] sm:$0x1]
    %121 = vrot.lane.b32.xlu0 %v120, 48
    %v122 = vpop.permute.xlu0 %121
    %vm123 = vcmask 425344
    %124 = vst.msk [vmem:[#allocation0] sm:$0x1] %vm123, %v122
    %s125 = scalar_lea.vmem %s0, 11
    %v126 = vld [vmem:[%s125] sm:$0x1]
    %127 = vrot.lane.b32.xlu0 %v126, 44
    %v128 = vpop.permute.xlu0 %127
    %vm129 = vcmask 392544
    %130 = vst.msk [vmem:[#allocation0] sm:$0x1] %vm129, %v128
    %s131 = scalar_lea.vmem %s0, 10
    %v132 = vld [vmem:[%s131] sm:$0x1]
    %133 = vrot.lane.b32.xlu0 %v132, 40
    %v134 = vpop.permute.xlu0 %133
    %vm135 = vcmask 359744
    %136 = vst.msk [vmem:[#allocation0] sm:$0x1] %vm135, %v134
    %s137 = scalar_lea.vmem %s0, 9
    %v138 = vld [vmem:[%s137] sm:$0x1]
    %139 = vrot.lane.b32.xlu0 %v138, 36
    %v140 = vpop.permute.xlu0 %139
    %vm141 = vcmask 326944
    %142 = vst.msk [vmem:[#allocation0] sm:$0x1] %vm141, %v140
    %s143 = scalar_lea.vmem %s0, 8
    %v144 = vld [vmem:[%s143] sm:$0x1]
    %145 = vrot.lane.b32.xlu0 %v144, 32
    %v146 = vpop.permute.xlu0 %145
    %vm147 = vcmask 294144
    %148 = vst.msk [vmem:[#allocation0] sm:$0x1] %vm147, %v146
    %s149 = scalar_lea.vmem %s0, 7
    %v150 = vld [vmem:[%s149] sm:$0x1]
    %151 = vrot.lane.b32.xlu0 %v150, 28
    %v152 = vpop.permute.xlu0 %151
    %vm153 = vcmask 261344
    %154 = vst.msk [vmem:[#allocation0] sm:$0x1] %vm153, %v152
    %s155 = scalar_lea.vmem %s0, 6
    %v156 = vld [vmem:[%s155] sm:$0x1]
    %157 = vrot.lane.b32.xlu0 %v156, 24
    %v158 = vpop.permute.xlu0 %157
    %vm159 = vcmask 228544
    %160 = vst.msk [vmem:[#allocation0] sm:$0x1] %vm159, %v158
    %s161 = scalar_lea.vmem %s0, 5
    %v162 = vld [vmem:[%s161] sm:$0x1]
    %163 = vrot.lane.b32.xlu0 %v162, 20
    %v164 = vpop.permute.xlu0 %163
    %vm165 = vcmask 195744
    %166 = vst.msk [vmem:[#allocation0] sm:$0x1] %vm165, %v164
    %s167 = scalar_lea.vmem %s0, 4
    %v168 = vld [vmem:[%s167] sm:$0x1]
    %169 = vrot.lane.b32.xlu0 %v168, 16
    %v170 = vpop.permute.xlu0 %169
    %vm171 = vcmask 162944
    %172 = vst.msk [vmem:[#allocation0] sm:$0x1] %vm171, %v170
    %s173 = scalar_lea.vmem %s0, 3
    %v174 = vld [vmem:[%s173] sm:$0x1]
    %175 = vrot.lane.b32.xlu0 %v174, 12
    %v176 = vpop.permute.xlu0 %175
    %vm177 = vcmask 130144
    %178 = vst.msk [vmem:[#allocation0] sm:$0x1] %vm177, %v176
    %s179 = scalar_lea.vmem %s0, 2
    %v180 = vld [vmem:[%s179] sm:$0x1]
    %181 = vrot.lane.b32.xlu0 %v180, 8
    %v182 = vpop.permute.xlu0 %181
    %vm183 = vcmask 97344
    %184 = vst.msk [vmem:[#allocation0] sm:$0x1] %vm183, %v182
    %s185 = scalar_lea.vmem %s0, 1
    %v186 = vld [vmem:[%s185] sm:$0x1]
    %187 = vrot.lane.b32.xlu0 %v186, 4
    %v188 = vpop.permute.xlu0 %187
    %vm189 = vcmask 64544
    %190 = vst.msk [vmem:[#allocation0] sm:$0x1] %vm189, %v188
    %s192 = sshllo.u32 0, 1
    %v194 = vld [vmem:[#allocation0] sm:%s192]
    %s195 = sshllo.u32 0, 1
    %196 = vst [vmem:[%s1] sm:%s195] %v194

// kernel: resnet_block_light.1
$region0: #{resnet_block_light.1}
  #allocation0 [shape = 'u32[]', space=smem, size = 0x4, offset = 0x4, fixed_abs, tag = 'smem constant byte address 0x4 - core index']
  #allocation1 [shape = 'u32[144,128]{1,0:T(1,128)}', space=vmem, size = 0x12000, scoped, tag = 'internal scratch']
  %s0 = inlined_call_operand.vmem [shape: f32[16,128], index: 0, kind: input, shape index: {}]
  %s1 = inlined_call_operand.vmem [shape: f32[384,128], index: 1, kind: input, shape index: {}]
  %s2 = inlined_call_operand.vmem [shape: f32[1,128], index: 2, kind: input, shape index: {}]
  %s3 = inlined_call_operand.vmem [shape: f32[384,128], index: 3, kind: input, shape index: {}]
  %s4 = inlined_call_operand.vmem [shape: f32[1,128], index: 4, kind: input, shape index: {}]
  %s5 = inlined_call_operand.vmem [shape: f32[16,128], index: 5, kind: output, shape index: {}]
  %s6 = sld [smem:[#allocation0]]
  $region30: #{resnet_block_light.1} parent=0
    _
  %s8 = ssub.s32 1, %s6
  %s9 = scalar_select 0, %s8, %s6
  // Predicated region
  $region2: #{resnet_block_light.1} parent=0 // pred_check
    _
  $region3: #{resnet_block_light.1} parent=0 // pred_check_branch
    %11 = sbr.rel (0) target = $region5
  $region4: #{resnet_block_light.1} parent=0 // pred_region
    _
  $region5: #{resnet_block_light.1} parent=0 // pred_fallthru
    _
  // Predicated region
  $region6: #{resnet_block_light.1} parent=0 // pred_check
    _
  $region7: #{resnet_block_light.1} parent=0 // pred_check_branch
    %13 = sbr.rel (0) target = $region9
  $region8: #{resnet_block_light.1} parent=0 // pred_region
    _
  $region9: #{resnet_block_light.1} parent=0 // pred_fallthru
    _
  // Predicated region
  $region10: #{resnet_block_light.1} parent=0 // pred_check
    _
  $region11: #{resnet_block_light.1} parent=0 // pred_check_branch
    %15 = sbr.rel (0) target = $region13
  $region12: #{resnet_block_light.1} parent=0 // pred_region
    _
  $region13: #{resnet_block_light.1} parent=0 // pred_fallthru
    _
  // Predicated region
  $region14: #{resnet_block_light.1} parent=0 // pred_check
    _
  $region15: #{resnet_block_light.1} parent=0 // pred_check_branch
    %17 = sbr.rel (0) target = $region17
  $region16: #{resnet_block_light.1} parent=0 // pred_region
    _
  $region17: #{resnet_block_light.1} parent=0 // pred_fallthru
    _
  // Predicated region
  $region18: #{resnet_block_light.1} parent=0 // pred_check
    _
  $region19: #{resnet_block_light.1} parent=0 // pred_check_branch
    %19 = sbr.rel (0) target = $region21
  $region20: #{resnet_block_light.1} parent=0 // pred_region
    _
  $region21: #{resnet_block_light.1} parent=0 // pred_fallthru
    _
  %v20 = vld [vmem:[%s0] sm:$0xff]
  %v21 = vld [vmem:[%s0 + $0x8] sm:$0xff]
  %v22 = vlaneseq
  %v23 = vshrl.u32 %v22, 7
  %v24 = vadd.s32 %v23, 8
  %vm25 = vcmp.eq.s32.totalorder %v23, 0
  %vm26 = vcmp.eq.s32.totalorder %v24, 0
  %vm27 = vcmp.eq.s32.totalorder %v23, 15
  %vm28 = vcmp.eq.s32.totalorder %v24, 15
  %v29 = vrot.slane %v20, 7
  %v30 = vrot.slane %v21, 7
  %vm31 = vcmp.lt.s32.totalorder %v23, 1
  %v32 = vsel %vm31, %v29, %v30
  %v33 = vsel %vm31, %v30, %v29
  %v34 = vsel %vm25, 1, 0
  %v35 = vsel %vm26, 1, 0
  %vm36 = vcmp.eq.s32.totalorder %v34, 1
  %vm37 = vcmp.eq.s32.totalorder %v35, 1
  %v38 = vsel %vm36, 0.0, %v33
  %v39 = vsel %vm37, 0.0, %v32
  %v40 = vrot.slane %v20, 1
  %v41 = vrot.slane %v21, 1
  %vm42 = vcmp.lt.s32.totalorder %v23, 7
  %v43 = vsel %vm42, %v40, %v41
  %v44 = vsel %vm42, %v41, %v40
  %v45 = vsel %vm27, 1, 0
  %v46 = vsel %vm28, 1, 0
  %vm47 = vcmp.eq.s32.totalorder %v45, 1
  %vm48 = vcmp.eq.s32.totalorder %v46, 1
  %v49 = vsel %vm47, 0.0, %v43
  %v50 = vsel %vm48, 0.0, %v44
  %v51 = vld [vmem:[%s1] sm:$0xff]
  %v52 = vld [vmem:[%s1 + $0x8] sm:$0xff]
  %v53 = vld [vmem:[%s1 + $0x10] sm:$0xff]
  %v54 = vld [vmem:[%s1 + $0x18] sm:$0xff]
  %v55 = vld [vmem:[%s1 + $0x20] sm:$0xff]
  %v56 = vld [vmem:[%s1 + $0x28] sm:$0xff]
  %v57 = vld [vmem:[%s1 + $0x30] sm:$0xff]
  %v58 = vld [vmem:[%s1 + $0x38] sm:$0xff]
  %v59 = vld [vmem:[%s1 + $0x40] sm:$0xff]
  %v60 = vld [vmem:[%s1 + $0x48] sm:$0xff]
  %v61 = vld [vmem:[%s1 + $0x50] sm:$0xff]
  %v62 = vld [vmem:[%s1 + $0x58] sm:$0xff]
  %v63 = vld [vmem:[%s1 + $0x60] sm:$0xff]
  %v64 = vld [vmem:[%s1 + $0x68] sm:$0xff]
  %v65 = vld [vmem:[%s1 + $0x70] sm:$0xff]
  %v66 = vld [vmem:[%s1 + $0x78] sm:$0xff]
  %v67 = vld [vmem:[%s1 + $0x80] sm:$0xff]
  %v68 = vld [vmem:[%s1 + $0x88] sm:$0xff]
  %v69 = vld [vmem:[%s1 + $0x90] sm:$0xff]
  %v70 = vld [vmem:[%s1 + $0x98] sm:$0xff]
  %v71 = vld [vmem:[%s1 + $0xa0] sm:$0xff]
  %v72 = vld [vmem:[%s1 + $0xa8] sm:$0xff]
  %v73 = vld [vmem:[%s1 + $0xb0] sm:$0xff]
  %v74 = vld [vmem:[%s1 + $0xb8] sm:$0xff]
  %v75 = vld [vmem:[%s1 + $0xc0] sm:$0xff]
  %v76 = vld [vmem:[%s1 + $0xc8] sm:$0xff]
  %v77 = vld [vmem:[%s1 + $0xd0] sm:$0xff]
  %v78 = vld [vmem:[%s1 + $0xd8] sm:$0xff]
  %v79 = vld [vmem:[%s1 + $0xe0] sm:$0xff]
  %v80 = vld [vmem:[%s1 + $0xe8] sm:$0xff]
  %v81 = vld [vmem:[%s1 + $0xf0] sm:$0xff]
  %v82 = vld [vmem:[%s1 + $0xf8] sm:$0xff]
  %v83 = vld [vmem:[%s1 + $0x100] sm:$0xff]
  %v84 = vld [vmem:[%s1 + $0x108] sm:$0xff]
  %v85 = vld [vmem:[%s1 + $0x110] sm:$0xff]
  %v86 = vld [vmem:[%s1 + $0x118] sm:$0xff]
  %v87 = vld [vmem:[%s1 + $0x120] sm:$0xff]
  %v88 = vld [vmem:[%s1 + $0x128] sm:$0xff]
  %v89 = vld [vmem:[%s1 + $0x130] sm:$0xff]
  %v90 = vld [vmem:[%s1 + $0x138] sm:$0xff]
  %v91 = vld [vmem:[%s1 + $0x140] sm:$0xff]
  %v92 = vld [vmem:[%s1 + $0x148] sm:$0xff]
  %v93 = vld [vmem:[%s1 + $0x150] sm:$0xff]
  %v94 = vld [vmem:[%s1 + $0x158] sm:$0xff]
  %v95 = vld [vmem:[%s1 + $0x160] sm:$0xff]
  %v96 = vld [vmem:[%s1 + $0x168] sm:$0xff]
  %v97 = vld [vmem:[%s1 + $0x170] sm:$0xff]
  %v98 = vld [vmem:[%s1 + $0x178] sm:$0xff]
  %v99 = vld [vmem:[%s2] sm:$0x1]
  %v101 = vlaneseq
  %v102 = vshrl.u32 %v101, 7
  %v103 = vsub.s32 0, %v102
  %v104 = vrot.slane %v99, %v103
  %106 = vmatprep.subr.mxu0 0.0
  %107 = vmatpush1.msra.mxu0 %v51
  %108 = vmatprep.subr.mxu0 0.0
  %109 = vmatpush1.msra.mxu0 %v52
  %110 = vmatprep.subr.mxu0 0.0
  %111 = vmatpush1.msra.mxu0 %v53
  %112 = vmatprep.subr.mxu0 0.0
  %113 = vmatpush1.msra.mxu0 %v54
  %114 = vmatprep.subr.mxu0 0.0
  %115 = vmatpush1.msra.mxu0 %v55
  %116 = vmatprep.subr.mxu0 0.0
  %117 = vmatpush1.msra.mxu0 %v56
  %118 = vmatprep.subr.mxu0 0.0
  %119 = vmatpush1.msra.mxu0 %v57
  %120 = vmatprep.subr.mxu0 0.0
  %121 = vmatpush1.msra.mxu0 %v58
  %122 = vmatprep.subr.mxu0 0.0
  %123 = vmatpush1.msra.mxu0 %v59
  %124 = vmatprep.subr.mxu0 0.0
  %125 = vmatpush1.msra.mxu0 %v60
  %126 = vmatprep.subr.mxu0 0.0
  %127 = vmatpush1.msra.mxu0 %v61
  %128 = vmatprep.subr.mxu0 0.0
  %129 = vmatpush1.msra.mxu0 %v62
  %130 = vmatprep.subr.mxu0 0.0
  %131 = vmatpush1.msra.mxu0 %v63
  %132 = vmatprep.subr.mxu0 0.0
  %133 = vmatpush1.msra.mxu0 %v64
  %134 = vmatprep.subr.mxu0 0.0
  %135 = vmatpush1.msra.mxu0 %v65
  %136 = vmatprep.subr.mxu0 0.0
  %137 = vmatpush1.msra.mxu0 %v66
  %138 = vmatprep.subr.mxu0 0.0
  %139 = vmatpush1.msra.mxu0 %v67
  %140 = vmatprep.subr.mxu0 0.0
  %141 = vmatpush1.msra.mxu0 %v68
  %142 = vmatprep.subr.mxu0 0.0
  %143 = vmatpush1.msra.mxu0 %v69
  %144 = vmatprep.subr.mxu0 0.0
  %145 = vmatpush1.msra.mxu0 %v70
  %146 = vmatprep.subr.mxu0 0.0
  %147 = vmatpush1.msra.mxu0 %v71
  %148 = vmatprep.subr.mxu0 0.0
  %149 = vmatpush1.msra.mxu0 %v72
  %150 = vmatprep.subr.mxu0 0.0
  %151 = vmatpush1.msra.mxu0 %v73
  %152 = vmatprep.subr.mxu0 0.0
  %153 = vmatpush1.msra.mxu0 %v74
  %154 = vmatprep.subr.mxu0 0.0
  %155 = vmatpush1.msra.mxu0 %v75
  %156 = vmatprep.subr.mxu0 0.0
  %157 = vmatpush1.msra.mxu0 %v76
  %158 = vmatprep.subr.mxu0 0.0
  %159 = vmatpush1.msra.mxu0 %v77
  %160 = vmatprep.subr.mxu0 0.0
  %161 = vmatpush1.msra.mxu0 %v78
  %162 = vmatprep.subr.mxu0 0.0
  %163 = vmatpush1.msra.mxu0 %v79
  %164 = vmatprep.subr.mxu0 0.0
  %165 = vmatpush1.msra.mxu0 %v80
  %166 = vmatprep.subr.mxu0 0.0
  %167 = vmatpush1.msra.mxu0 %v81
  %168 = vmatprep.subr.mxu0 0.0
  %169 = vmatpush1.msra.mxu0 %v82
  %170 = vmatprep.mubr.f32.mxu0 %v20
  %171 = vmatmul.mubr.f32.gmra.mrb[0].mxu0 %v38
  %v172 = vpop.f32.mrb[0].mxu0
  %v173 = vadd.f32 %v104, %v172
  %v174 = vpop.f32.mrb[0].mxu0
  %175 = vmatprep.mubr.f32.mxu0 %v21
  %176 = vmatmul.mubr.f32.gmra.mrb[0].mxu0 %v39
  %v177 = vpop.f32.mrb[0].mxu0
  %v178 = vadd.f32 %v104, %v177
  %v179 = vpop.f32.mrb[0].mxu0
  %180 = vdwg.mxu0
  %181 = vmatprep.subr.mxu0 0.0
  %182 = vmatpush1.msra.mxu0 %v83
  %183 = vmatprep.subr.mxu0 0.0
  %184 = vmatpush1.msra.mxu0 %v84
  %185 = vmatprep.subr.mxu0 0.0
  %186 = vmatpush1.msra.mxu0 %v85
  %187 = vmatprep.subr.mxu0 0.0
  %188 = vmatpush1.msra.mxu0 %v86
  %189 = vmatprep.subr.mxu0 0.0
  %190 = vmatpush1.msra.mxu0 %v87
  %191 = vmatprep.subr.mxu0 0.0
  %192 = vmatpush1.msra.mxu0 %v88
  %193 = vmatprep.subr.mxu0 0.0
  %194 = vmatpush1.msra.mxu0 %v89
  %195 = vmatprep.subr.mxu0 0.0
  %196 = vmatpush1.msra.mxu0 %v90
  %197 = vmatprep.subr.mxu0 0.0
  %198 = vmatpush1.msra.mxu0 %v91
  %199 = vmatprep.subr.mxu0 0.0
  %200 = vmatpush1.msra.mxu0 %v92
  %201 = vmatprep.subr.mxu0 0.0
  %202 = vmatpush1.msra.mxu0 %v93
  %203 = vmatprep.subr.mxu0 0.0
  %204 = vmatpush1.msra.mxu0 %v94
  %205 = vmatprep.subr.mxu0 0.0
  %206 = vmatpush1.msra.mxu0 %v95
  %207 = vmatprep.subr.mxu0 0.0
  %208 = vmatpush1.msra.mxu0 %v96
  %209 = vmatprep.subr.mxu0 0.0
  %210 = vmatpush1.msra.mxu0 %v97
  %211 = vmatprep.subr.mxu0 0.0
  %212 = vmatpush1.msra.mxu0 %v98
  %213 = vmatprep.subr.mxu0 0.0
  %214 = vmatpush1.msra.mxu0 0.0
  %215 = vmatprep.subr.mxu0 0.0
  %216 = vmatpush1.msra.mxu0 0.0
  %217 = vmatprep.subr.mxu0 0.0
  %218 = vmatpush1.msra.mxu0 0.0
  %219 = vmatprep.subr.mxu0 0.0
  %220 = vmatpush1.msra.mxu0 0.0
  %221 = vmatprep.subr.mxu0 0.0
  %222 = vmatpush1.msra.mxu0 0.0
  %223 = vmatprep.subr.mxu0 0.0
  %224 = vmatpush1.msra.mxu0 0.0
  %225 = vmatprep.subr.mxu0 0.0
  %226 = vmatpush1.msra.mxu0 0.0
  %227 = vmatprep.subr.mxu0 0.0
  %228 = vmatpush1.msra.mxu0 0.0
  %229 = vmatprep.subr.mxu0 0.0
  %230 = vmatpush1.msra.mxu0 0.0
  %231 = vmatprep.subr.mxu0 0.0
  %232 = vmatpush1.msra.mxu0 0.0
  %233 = vmatprep.subr.mxu0 0.0
  %234 = vmatpush1.msra.mxu0 0.0
  %235 = vmatprep.subr.mxu0 0.0
  %236 = vmatpush1.msra.mxu0 0.0
  %237 = vmatprep.subr.mxu0 0.0
  %238 = vmatpush1.msra.mxu0 0.0
  %239 = vmatprep.subr.mxu0 0.0
  %240 = vmatpush1.msra.mxu0 0.0
  %241 = vmatprep.subr.mxu0 0.0
  %242 = vmatpush1.msra.mxu0 0.0
  %243 = vmatprep.subr.mxu0 0.0
  %244 = vmatpush1.msra.mxu0 0.0
  %245 = vmatprep.mubr.f32.mxu0 0.0
  %246 = vmatmul.mubr.f32.gmra.mrb[0].mxu0 %v49
  %v247 = vpop.f32.mrb[0].mxu0
  %v248 = vadd.f32 %v173, %v247
  %v249 = vpop.f32.mrb[0].mxu0
  %250 = vmatprep.mubr.f32.mxu0 0.0
  %251 = vmatmul.mubr.f32.gmra.mrb[0].mxu0 %v50
  %v252 = vpop.f32.mrb[0].mxu0
  %v253 = vadd.f32 %v178, %v252
  %v254 = vpop.f32.mrb[0].mxu0
  %255 = vdwg.mxu0
  %v256 = vmax.f32 %v248, 0.0
  %v257 = vmax.f32 %v253, 0.0
  %v258 = vrot.slane %v256, 7
  %v259 = vrot.slane %v257, 7
  %v260 = vsel %vm31, %v258, %v259
  %v261 = vsel %vm31, %v259, %v258
  %v262 = vsel %vm36, 0.0, %v261
  %v263 = vsel %vm37, 0.0, %v260
  %v264 = vrot.slane %v256, 1
  %v265 = vrot.slane %v257, 1
  %v266 = vsel %vm42, %v264, %v265
  %v267 = vsel %vm42, %v265, %v264
  %v268 = vsel %vm47, 0.0, %v266
  %v269 = vsel %vm48, 0.0, %v267
  %v270 = vld [vmem:[%s3] sm:$0xff]
  %v271 = vld [vmem:[%s3 + $0x8] sm:$0xff]
  %v272 = vld [vmem:[%s3 + $0x10] sm:$0xff]
  %v273 = vld [vmem:[%s3 + $0x18] sm:$0xff]
  %v274 = vld [vmem:[%s3 + $0x20] sm:$0xff]
  %v275 = vld [vmem:[%s3 + $0x28] sm:$0xff]
  %v276 = vld [vmem:[%s3 + $0x30] sm:$0xff]
  %v277 = vld [vmem:[%s3 + $0x38] sm:$0xff]
  %v278 = vld [vmem:[%s3 + $0x40] sm:$0xff]
  %v279 = vld [vmem:[%s3 + $0x48] sm:$0xff]
  %v280 = vld [vmem:[%s3 + $0x50] sm:$0xff]
  %v281 = vld [vmem:[%s3 + $0x58] sm:$0xff]
  %v282 = vld [vmem:[%s3 + $0x60] sm:$0xff]
  %v283 = vld [vmem:[%s3 + $0x68] sm:$0xff]
  %v284 = vld [vmem:[%s3 + $0x70] sm:$0xff]
  %v285 = vld [vmem:[%s3 + $0x78] sm:$0xff]
  %v286 = vld [vmem:[%s3 + $0x80] sm:$0xff]
  %v287 = vld [vmem:[%s3 + $0x88] sm:$0xff]
  %v288 = vld [vmem:[%s3 + $0x90] sm:$0xff]
  %v289 = vld [vmem:[%s3 + $0x98] sm:$0xff]
  %v290 = vld [vmem:[%s3 + $0xa0] sm:$0xff]
  %v291 = vld [vmem:[%s3 + $0xa8] sm:$0xff]
  %v292 = vld [vmem:[%s3 + $0xb0] sm:$0xff]
  %v293 = vld [vmem:[%s3 + $0xb8] sm:$0xff]
  %v294 = vld [vmem:[%s3 + $0xc0] sm:$0xff]
  %v295 = vld [vmem:[%s3 + $0xc8] sm:$0xff]
  %v296 = vld [vmem:[%s3 + $0xd0] sm:$0xff]
  %v297 = vld [vmem:[%s3 + $0xd8] sm:$0xff]
  %v298 = vld [vmem:[%s3 + $0xe0] sm:$0xff]
  %v299 = vld [vmem:[%s3 + $0xe8] sm:$0xff]
  %v300 = vld [vmem:[%s3 + $0xf0] sm:$0xff]
  %v301 = vld [vmem:[%s3 + $0xf8] sm:$0xff]
  %v302 = vld [vmem:[%s3 + $0x100] sm:$0xff]
  %v303 = vld [vmem:[%s3 + $0x108] sm:$0xff]
  %v304 = vld [vmem:[%s3 + $0x110] sm:$0xff]
  %v305 = vld [vmem:[%s3 + $0x118] sm:$0xff]
  %v306 = vld [vmem:[%s3 + $0x120] sm:$0xff]
  %v307 = vld [vmem:[%s3 + $0x128] sm:$0xff]
  %v308 = vld [vmem:[%s3 + $0x130] sm:$0xff]
  %v309 = vld [vmem:[%s3 + $0x138] sm:$0xff]
  %v310 = vld [vmem:[%s3 + $0x140] sm:$0xff]
  %v311 = vld [vmem:[%s3 + $0x148] sm:$0xff]
  %v312 = vld [vmem:[%s3 + $0x150] sm:$0xff]
  %v313 = vld [vmem:[%s3 + $0x158] sm:$0xff]
  %v314 = vld [vmem:[%s3 + $0x160] sm:$0xff]
  %v315 = vld [vmem:[%s3 + $0x168] sm:$0xff]
  %v316 = vld [vmem:[%s3 + $0x170] sm:$0xff]
  %v317 = vld [vmem:[%s3 + $0x178] sm:$0xff]
  %v318 = vld [vmem:[%s4] sm:$0x1]
  %v320 = vlaneseq
  %v321 = vshrl.u32 %v320, 7
  %v322 = vsub.s32 0, %v321
  %v323 = vrot.slane %v318, %v322
  %325 = vmatprep.subr.mxu0 0.0
  %326 = vmatpush1.msra.mxu0 %v270
  %327 = vmatprep.subr.mxu0 0.0
  %328 = vmatpush1.msra.mxu0 %v271
  %329 = vmatprep.subr.mxu0 0.0
  %330 = vmatpush1.msra.mxu0 %v272
  %331 = vmatprep.subr.mxu0 0.0
  %332 = vmatpush1.msra.mxu0 %v273
  %333 = vmatprep.subr.mxu0 0.0
  %334 = vmatpush1.msra.mxu0 %v274
  %335 = vmatprep.subr.mxu0 0.0
  %336 = vmatpush1.msra.mxu0 %v275
  %337 = vmatprep.subr.mxu0 0.0
  %338 = vmatpush1.msra.mxu0 %v276
  %339 = vmatprep.subr.mxu0 0.0
  %340 = vmatpush1.msra.mxu0 %v277
  %341 = vmatprep.subr.mxu0 0.0
  %342 = vmatpush1.msra.mxu0 %v278
  %343 = vmatprep.subr.mxu0 0.0
  %344 = vmatpush1.msra.mxu0 %v279
  %345 = vmatprep.subr.mxu0 0.0
  %346 = vmatpush1.msra.mxu0 %v280
  %347 = vmatprep.subr.mxu0 0.0
  %348 = vmatpush1.msra.mxu0 %v281
  %349 = vmatprep.subr.mxu0 0.0
  %350 = vmatpush1.msra.mxu0 %v282
  %351 = vmatprep.subr.mxu0 0.0
  %352 = vmatpush1.msra.mxu0 %v283
  %353 = vmatprep.subr.mxu0 0.0
  %354 = vmatpush1.msra.mxu0 %v284
  %355 = vmatprep.subr.mxu0 0.0
  %356 = vmatpush1.msra.mxu0 %v285
  %357 = vmatprep.subr.mxu0 0.0
  %358 = vmatpush1.msra.mxu0 %v286
  %359 = vmatprep.subr.mxu0 0.0
  %360 = vmatpush1.msra.mxu0 %v287
  %361 = vmatprep.subr.mxu0 0.0
  %362 = vmatpush1.msra.mxu0 %v288
  %363 = vmatprep.subr.mxu0 0.0
  %364 = vmatpush1.msra.mxu0 %v289
  %365 = vmatprep.subr.mxu0 0.0
  %366 = vmatpush1.msra.mxu0 %v290
  %367 = vmatprep.subr.mxu0 0.0
  %368 = vmatpush1.msra.mxu0 %v291
  %369 = vmatprep.subr.mxu0 0.0
  %370 = vmatpush1.msra.mxu0 %v292
  %371 = vmatprep.subr.mxu0 0.0
  %372 = vmatpush1.msra.mxu0 %v293
  %373 = vmatprep.subr.mxu0 0.0
  %374 = vmatpush1.msra.mxu0 %v294
  %375 = vmatprep.subr.mxu0 0.0
  %376 = vmatpush1.msra.mxu0 %v295
  %377 = vmatprep.subr.mxu0 0.0
  %378 = vmatpush1.msra.mxu0 %v296
  %379 = vmatprep.subr.mxu0 0.0
  %380 = vmatpush1.msra.mxu0 %v297
  %381 = vmatprep.subr.mxu0 0.0
  %382 = vmatpush1.msra.mxu0 %v298
  %383 = vmatprep.subr.mxu0 0.0
  %384 = vmatpush1.msra.mxu0 %v299
  %385 = vmatprep.subr.mxu0 0.0
  %386 = vmatpush1.msra.mxu0 %v300
  %387 = vmatprep.subr.mxu0 0.0
  %388 = vmatpush1.msra.mxu0 %v301
  %389 = vmatprep.mubr.f32.mxu0 %v256
  %390 = vmatmul.mubr.f32.gmra.mrb[0].mxu0 %v262
  %v391 = vpop.f32.mrb[0].mxu0
  %v392 = vadd.f32 %v323, %v391
  %v393 = vpop.f32.mrb[0].mxu0
  %394 = vmatprep.mubr.f32.mxu0 %v257
  %395 = vmatmul.mubr.f32.gmra.mrb[0].mxu0 %v263
  %v396 = vpop.f32.mrb[0].mxu0
  %v397 = vadd.f32 %v323, %v396
  %v398 = vpop.f32.mrb[0].mxu0
  %399 = vdwg.mxu0
  %400 = vmatprep.subr.mxu0 0.0
  %401 = vmatpush1.msra.mxu0 %v302
  %402 = vmatprep.subr.mxu0 0.0
  %403 = vmatpush1.msra.mxu0 %v303
  %404 = vmatprep.subr.mxu0 0.0
  %405 = vmatpush1.msra.mxu0 %v304
  %406 = vmatprep.subr.mxu0 0.0
  %407 = vmatpush1.msra.mxu0 %v305
  %408 = vmatprep.subr.mxu0 0.0
  %409 = vmatpush1.msra.mxu0 %v306
  %410 = vmatprep.subr.mxu0 0.0
  %411 = vmatpush1.msra.mxu0 %v307
  %412 = vmatprep.subr.mxu0 0.0
  %413 = vmatpush1.msra.mxu0 %v308
  %414 = vmatprep.subr.mxu0 0.0
  %415 = vmatpush1.msra.mxu0 %v309
  %416 = vmatprep.subr.mxu0 0.0
  %417 = vmatpush1.msra.mxu0 %v310
  %418 = vmatprep.subr.mxu0 0.0
  %419 = vmatpush1.msra.mxu0 %v311
  %420 = vmatprep.subr.mxu0 0.0
  %421 = vmatpush1.msra.mxu0 %v312
  %422 = vmatprep.subr.mxu0 0.0
  %423 = vmatpush1.msra.mxu0 %v313
  %424 = vmatprep.subr.mxu0 0.0
  %425 = vmatpush1.msra.mxu0 %v314
  %426 = vmatprep.subr.mxu0 0.0
  %427 = vmatpush1.msra.mxu0 %v315
  %428 = vmatprep.subr.mxu0 0.0
  %429 = vmatpush1.msra.mxu0 %v316
  %430 = vmatprep.subr.mxu0 0.0
  %431 = vmatpush1.msra.mxu0 %v317
  %432 = vmatprep.subr.mxu0 0.0
  %433 = vmatpush1.msra.mxu0 0.0
  %434 = vmatprep.subr.mxu0 0.0
  %435 = vmatpush1.msra.mxu0 0.0
  %436 = vmatprep.subr.mxu0 0.0
  %437 = vmatpush1.msra.mxu0 0.0
  %438 = vmatprep.subr.mxu0 0.0
  %439 = vmatpush1.msra.mxu0 0.0
  %440 = vmatprep.subr.mxu0 0.0
  %441 = vmatpush1.msra.mxu0 0.0
  %442 = vmatprep.subr.mxu0 0.0
  %443 = vmatpush1.msra.mxu0 0.0
  %444 = vmatprep.subr.mxu0 0.0
  %445 = vmatpush1.msra.mxu0 0.0
  %446 = vmatprep.subr.mxu0 0.0
  %447 = vmatpush1.msra.mxu0 0.0
  %448 = vmatprep.subr.mxu0 0.0
  %449 = vmatpush1.msra.mxu0 0.0
  %450 = vmatprep.subr.mxu0 0.0
  %451 = vmatpush1.msra.mxu0 0.0
  %452 = vmatprep.subr.mxu0 0.0
  %453 = vmatpush1.msra.mxu0 0.0
  %454 = vmatprep.subr.mxu0 0.0
  %455 = vmatpush1.msra.mxu0 0.0
  %456 = vmatprep.subr.mxu0 0.0
  %457 = vmatpush1.msra.mxu0 0.0
  %458 = vmatprep.subr.mxu0 0.0
  %459 = vmatpush1.msra.mxu0 0.0
  %460 = vmatprep.subr.mxu0 0.0
  %461 = vmatpush1.msra.mxu0 0.0
  %462 = vmatprep.subr.mxu0 0.0
  %463 = vmatpush1.msra.mxu0 0.0
  %464 = vmatprep.mubr.f32.mxu0 0.0
  %465 = vmatmul.mubr.f32.gmra.mrb[0].mxu0 %v268
  %v466 = vpop.f32.mrb[0].mxu0
  %v467 = vadd.f32 %v392, %v466
  %v468 = vpop.f32.mrb[0].mxu0
  %469 = vmatprep.mubr.f32.mxu0 0.0
  %470 = vmatmul.mubr.f32.gmra.mrb[0].mxu0 %v269
  %v471 = vpop.f32.mrb[0].mxu0
  %v472 = vadd.f32 %v397, %v471
  %v473 = vpop.f32.mrb[0].mxu0
  %474 = vdwg.mxu0
  %v475 = vadd.f32 %v467, %v20
  %v476 = vadd.f32 %v472, %v21
  %477 = vst [vmem:[%s5] sm:$0xff] %v475
  %478 = vst [vmem:[%s5 + $0x8] sm:$0xff] %v476
  // Predicated region
  $region22: #{resnet_block_light.1} parent=0 // pred_check
    _
  $region23: #{resnet_block_light.1} parent=0 // pred_check_branch
    %480 = sbr.rel (0) target = $region25
  $region24: #{resnet_block_light.1} parent=0 // pred_region
    _
  $region25: #{resnet_block_light.1} parent=0 // pred_fallthru
    _
  // Predicated region
  $region26: #{resnet_block_light.1} parent=0 // pred_check
    _
  $region27: #{resnet_block_light.1} parent=0 // pred_check_branch
    %482 = sbr.rel (0) target = $region29
  $region28: #{resnet_block_light.1} parent=0 // pred_region
    _
  $region29: #{resnet_block_light.1} parent=0 // pred_fallthru
    _

</llo_original>
